<compile_context>
chip_gen: v6e
topology: v6e:2x2x1
jax: 0.10.0
libtpu: 0.0.40
codegen_flags: <defaults>
</compile_context>

<pallas_src>
import jax
import jax.numpy as jnp
from jax.experimental import pallas as pl
from jax.experimental.pallas import tpu as pltpu


def _round_up(n: int, m: int) -> int:
    return ((n + m - 1) // m) * m


def _cdiv(a: int, b: int) -> int:
    return -(-a // b)


def _pad_to(arr, shape):
    pads = [(0, t - s) for s, t in zip(arr.shape, shape)]
    if all(p == (0, 0) for p in pads):
        return arr
    return jnp.pad(arr, pads)


def _pick_tile_b(batch: int, row_align: int, max_tile: int = 256) -> int:
    """Batch tile: sublane-aligned, <= 256 rows, and >= 2 tiles whenever batch allows so the
    'parallel' grid axis can shard across v7x's two TensorCores, without over-padding."""
    if batch <= row_align:
        return _round_up(batch, row_align)
    n_tiles = max(2, _cdiv(batch, max_tile))
    return _round_up(_cdiv(batch, n_tiles), row_align)


def _resident_spec(shape, index_map, single_buffer: bool):
    """BlockSpec for a block whose index never changes across the grid: optionally single
    buffered so the resident copy doesn't pay the default 2x double-buffering VMEM cost."""
    if single_buffer:
        try:
            return pl.BlockSpec(shape, index_map, pipeline_mode=pl.Buffered(1))
        except TypeError:  # older BlockSpec signature without pipeline_mode
            pass
    return pl.BlockSpec(shape, index_map)


def _make_mlp_kernel(num_layers: int, neg_slope: float, compute_dtype):
    """Fused MLP on one (batch-tile, output-column-tile).

    refs = (x, w0, b0, ..., w_{L-1}, b_{L-1}, out, hidden_scratch).
    Hidden stack (all layers but the last) is computed once per batch tile at j == 0 into
    the VMEM scratch; each grid step then does hidden @ W_last[:, j-tile] + b_last[j-tile].
    """
    num_hidden = num_layers - 1

    def kernel(*refs):
        x_ref = refs[0]
        o_ref = refs[1 + 2 * num_layers]
        h_ref = refs[2 + 2 * num_layers]           # VMEM scratch: (tile_b, hidden_pad)
        j = pl.program_id(1)

        @pl.when(j == 0)
        def _():
            h = x_ref[...]                          # already in compute_dtype
            for l in range(num_hidden):
                w = refs[1 + 2 * l][...]            # (in_pad, out_pad), compute_dtype
                b = refs[2 + 2 * l][...]            # (1, out_pad), f32 -> broadcast add
                a = jnp.dot(h, w, preferred_element_type=jnp.float32) + b
                if neg_slope != 1.0:                # LeakyReLU(slope=1) is identity: skip
                    a = jnp.where(a >= 0, a, neg_slope * a)
                h = a.astype(compute_dtype)
            h_ref[...] = h

        w_last = refs[1 + 2 * num_hidden][...]      # (hidden_pad, tile_n)
        b_last = refs[2 + 2 * num_hidden][...]      # (1, tile_n), f32
        out = jnp.dot(h_ref[...], w_last, preferred_element_type=jnp.float32) + b_last
        o_ref[...] = out.astype(o_ref.dtype)

    return kernel


def prepare_params(params, *, in_dim: int, compute_dtype=jnp.float32, max_tile_n: int = 2048):
    """Pad + cast the Linear stack ONCE (outside the forward path) and cache the result.

    Weights are (in, out).  Every feature dim is zero-padded to a lane-dense multiple of 128
    (exact: zero weight rows/cols + zero bias keep padded activations at 0); the last layer's
    output dim is padded to a multiple of tile_n so it can be streamed in column tiles.
    """
    assert max_tile_n % 128 == 0
    num_layers = len(params)
    assert num_layers >= 1
    assert params[0][0].shape[0] == in_dim
    dims = [in_dim] + [w.shape[1] for (w, _) in params]
    out_dim = dims[-1]
    tile_n = min(max_tile_n, _round_up(out_dim, 128))
    dims_pad = [_round_up(d, 128) for d in dims[:-1]] + [_round_up(out_dim, tile_n)]

    weights, biases = [], []
    for l, (w, b) in enumerate(params):
        w_p = _pad_to(w.astype(jnp.float32), (dims_pad[l], dims_pad[l + 1]))
        weights.append(w_p.astype(compute_dtype))
        biases.append(_pad_to(b.astype(jnp.float32).reshape(1, -1), (1, dims_pad[l + 1])))

    return {
        "weights": weights,            # compute_dtype, (in_pad, out_pad)
        "biases": biases,              # float32, (1, out_pad)
        "dims": dims,
        "dims_pad": dims_pad,
        "tile_n": tile_n,
        "compute_dtype": compute_dtype,
    }


def mlp_edge_attribute_predictor_forward(
    x,                         # (batch * num_nodes, node_in_channels), dense-batched
    prepared,                  # output of prepare_params (cached padded/cast weights)
    *,
    num_nodes: int,
    num_edges: int,
    edge_out_channels: int,
    neg_slope: float = 1.0,    # module uses LeakyReLU(negative_slope=1) == identity
    out_dtype=jnp.float32,     # bf16 halves writeback (v5e vst/HBM) if downstream allows
):
    # Precondition (to_dense_batch + .view): every graph owns exactly num_nodes contiguous
    # rows of x.  Ragged PyG batches are not supported.
    # TODO(synk): general to_dense_batch (ragged graphs with masking) has no clean Pallas
    # equivalent here; we assume the dense, fixed-num_nodes layout the module's .view implies.
    assert x.shape[0] % num_nodes == 0, "x rows must equal batch * num_nodes"
    batch = x.shape[0] // num_nodes
    node_in_channels = x.shape[1]
    in_dim = num_nodes * node_in_channels

    weights = prepared["weights"]
    biases = prepared["biases"]
    dims = prepared["dims"]
    dims_pad = prepared["dims_pad"]
    tile_n = prepared["tile_n"]
    compute_dtype = prepared["compute_dtype"]
    num_layers = len(weights)
    out_dim = dims[-1]
    assert dims[0] == in_dim
    assert out_dim == num_edges * edge_out_channels

    # ---- Batch (row) tiling.
    row_align = 16 if jnp.dtype(compute_dtype).itemsize < 4 else 8
    tile_b = _pick_tile_b(batch, row_align)
    b_pad = _round_up(batch, tile_b)
    n_tiles_b = b_pad // tile_b
    n_tiles_out = dims_pad[-1] // tile_n

    # Stream x in the MXU compute dtype (halves activation DMA for the bf16 path).
    x_flat = x.reshape(batch, in_dim).astype(compute_dtype)
    x_p = _pad_to(x_flat, (b_pad, dims_pad[0]))

    kernel_inputs = [x_p]
    for w, b in zip(weights, biases):
        kernel_inputs.append(w)
        kernel_inputs.append(b)

    kernel = _make_mlp_kernel(num_layers, neg_slope, compute_dtype)

    # ---- VMEM budget (conservative: counts double-buffering everywhere; capped at v7x 64 MiB).
    isz_c = jnp.dtype(compute_dtype).itemsize
    isz_o = jnp.dtype(out_dtype).itemsize
    need = 0
    for l in range(num_layers - 1):
        need += 2 * (dims_pad[l] * dims_pad[l + 1] * isz_c + 8 * dims_pad[l + 1] * 4)
    need += 2 * (dims_pad[-2] * tile_n * isz_c + 8 * tile_n * 4)   # last-layer column tile
    need += 2 * tile_b * dims_pad[0] * isz_c                        # x tile
    need += 2 * tile_b * tile_n * isz_o                             # out tile
    need += tile_b * dims_pad[-2] * isz_c                           # hidden scratch
    vmem_limit = int(min(max(need * 1.25 + (1 << 20), 16 << 20), 64 << 20))

    cost = pl.CostEstimate(
        flops=2 * b_pad * sum(dims_pad[l] * dims_pad[l + 1] for l in range(num_layers)),
        transcendentals=0,
        bytes_accessed=(int(x_p.size) * x_p.dtype.itemsize
                        + b_pad * dims_pad[-1] * isz_o
                        + sum(int(w.size) * w.dtype.itemsize for w in weights)
                        + sum(int(b.size) * b.dtype.itemsize for b in biases)),
    )

    def call(single_buffer_resident):
        in_specs = [pl.BlockSpec((tile_b, dims_pad[0]), lambda i, j: (i, 0))]
        for l in range(num_layers):
            if l < num_layers - 1:
                # Hidden weights/biases: constant block index -> DMA'd once, VMEM-resident.
                in_specs.append(_resident_spec((dims_pad[l], dims_pad[l + 1]),
                                               lambda i, j: (0, 0), single_buffer_resident))
                in_specs.append(_resident_spec((1, dims_pad[l + 1]),
                                               lambda i, j: (0, 0), single_buffer_resident))
            else:
                # Last layer: tiled along its output dim via grid axis j.
                const = (n_tiles_out == 1)
                in_specs.append(_resident_spec((dims_pad[l], tile_n), lambda i, j: (0, j),
                                               single_buffer_resident and const))
                in_specs.append(_resident_spec((1, tile_n), lambda i, j: (0, j),
                                               single_buffer_resident and const))
        out_specs = pl.BlockSpec((tile_b, tile_n), lambda i, j: (i, j))
        return pl.pallas_call(
            kernel,
            out_shape=jax.ShapeDtypeStruct((b_pad, dims_pad[-1]), out_dtype),
            grid=(n_tiles_b, n_tiles_out),
            in_specs=in_specs,
            out_specs=out_specs,
            scratch_shapes=[pltpu.VMEM((tile_b, dims_pad[-2]), compute_dtype)],
            compiler_params=pltpu.CompilerParams(
                dimension_semantics=("parallel", "arbitrary"),
                vmem_limit_bytes=vmem_limit,
            ),
            cost_estimate=cost,
        )(*kernel_inputs)

    try:
        out_p = call(True)       # single-buffer the never-refetched weight blocks
    except Exception:            # pl.Buffered(1) not supported in this build -> default pipeline
        out_p = call(False)

    # Strip padding, then glue: out.view(batch_size * num_edges, -1)
    out = out_p[:batch, :out_dim]
    return out.reshape(batch * num_edges, edge_out_channels)


def init_params(key, node_in_channels, fc_channels, edge_out_channels, num_nodes, num_edges):
    """Deterministic synthetic init mirroring the nn.Linear stack shapes (W stored as (in, out))."""
    dims = [num_nodes * node_in_channels] + list(fc_channels) + [num_edges * edge_out_channels]
    params = []
    for i in range(len(dims) - 1):
        key, kw, kb = jax.random.split(key, 3)
        bound = 1.0 / float(dims[i]) ** 0.5
        w = jax.random.uniform(kw, (dims[i], dims[i + 1]), jnp.float32, -bound, bound)
        b = jax.random.uniform(kb, (dims[i + 1],), jnp.float32, -bound, bound)
        params.append((w, b))
    return params


def reference_forward(x, params, *, num_nodes, num_edges, edge_out_channels, neg_slope=1.0):
    """Pure-JAX reference (HIGHEST-precision matmuls) for correctness checking."""
    batch = x.shape[0] // num_nodes
    h = x.reshape(batch, -1)
    for i, (w, b) in enumerate(params):
        h = jnp.dot(h, w, precision=jax.lax.Precision.HIGHEST) + b
        if i < len(params) - 1:
            h = jnp.where(h >= 0, h, neg_slope * h)
    return h.reshape(batch * num_edges, edge_out_channels)


if __name__ == "__main__":
    key = jax.random.PRNGKey(0)
    kx1, kp1, kx2, kp2 = jax.random.split(key, 4)

    # --- Config A: small shapes straight from the module.
    batch_size = 2
    node_in_channels = 4
    num_nodes = 8
    num_edges = 8
    edge_out_channels = 3
    fc_channels = [32, 64]
    in_dim = num_nodes * node_in_channels

    x = jax.random.normal(kx1, (batch_size * num_nodes, node_in_channels), jnp.float32)
    params = init_params(kp1, node_in_channels, fc_channels, edge_out_channels,
                         num_nodes, num_edges)
    ref = reference_forward(x, params, num_nodes=num_nodes, num_edges=num_edges,
                            edge_out_channels=edge_out_channels)

    # f32 MXU path.
    prep_f32 = prepare_params(params, in_dim=in_dim, compute_dtype=jnp.float32)
    out_f32 = mlp_edge_attribute_predictor_forward(
        x, prep_f32, num_nodes=num_nodes, num_edges=num_edges,
        edge_out_channels=edge_out_channels)
    out_f32 = jax.block_until_ready(out_f32)
    assert out_f32.shape == (batch_size * num_edges, edge_out_channels)
    assert jnp.allclose(out_f32, ref, atol=5e-3, rtol=5e-3)

    # bf16 MXU inputs (weights cached in bf16 once; x streamed bf16), f32 accumulation.
    prep_bf16 = prepare_params(params, in_dim=in_dim, compute_dtype=jnp.bfloat16)
    out_bf16 = mlp_edge_attribute_predictor_forward(
        x, prep_bf16, num_nodes=num_nodes, num_edges=num_edges,
        edge_out_channels=edge_out_channels)
    out_bf16 = jax.block_until_ready(out_bf16)
    assert out_bf16.shape == (batch_size * num_edges, edge_out_channels)
    assert jnp.allclose(out_bf16, ref, atol=5e-2, rtol=5e-2)

    # --- Config B: exercises the multi-tile batch axis and the N-tiled last layer
    # (max_tile_n=128 forces two output-column tiles at small scale).
    batch_size_b = 40
    num_edges_b = 48
    x_b = jax.random.normal(kx2, (batch_size_b * num_nodes, node_in_channels), jnp.float32)
    params_b = init_params(kp2, node_in_channels, fc_channels, edge_out_channels,
                           num_nodes, num_edges_b)
    ref_b = reference_forward(x_b, params_b, num_nodes=num_nodes, num_edges=num_edges_b,
                              edge_out_channels=edge_out_channels)
    prep_b = prepare_params(params_b, in_dim=in_dim, compute_dtype=jnp.float32,
                            max_tile_n=128)
    out_b = mlp_edge_attribute_predictor_forward(
        x_b, prep_b, num_nodes=num_nodes, num_edges=num_edges_b,
        edge_out_channels=edge_out_channels)
    out_b = jax.block_until_ready(out_b)
    assert out_b.shape == (batch_size_b * num_edges_b, edge_out_channels)
    assert jnp.allclose(out_b, ref_b, atol=5e-3, rtol=5e-3)

    print("KERNEL_OK")
</pallas_src>

<mosaic_0001>
module attributes {stable_mosaic.version = 11 : i64} {
  func.func @kernel(%arg0: i32, %arg1: i32, %arg2: memref<8x128xf32, #tpu.memory_space<vmem>>, %arg3: memref<128x128xf32, #tpu.memory_space<vmem>>, %arg4: memref<1x128xf32, #tpu.memory_space<vmem>>, %arg5: memref<128x128xf32, #tpu.memory_space<vmem>>, %arg6: memref<1x128xf32, #tpu.memory_space<vmem>>, %arg7: memref<128x128xf32, #tpu.memory_space<vmem>>, %arg8: memref<1x128xf32, #tpu.memory_space<vmem>>, %arg9: memref<8x128xf32, #tpu.memory_space<vmem>>, %arg10: memref<8x128xf32, #tpu.memory_space<vmem>>) attributes {dimension_semantics = [#tpu.dimension_semantics<parallel>, #tpu.dimension_semantics<arbitrary>], iteration_bounds = array<i64: 1, 1>, scalar_prefetch = 0 : i64, scratch_operands = 1 : i64, tpu.core_type = #tpu.core_type<tc>, window_params = [{transform_indices = @transform_0, window_bounds = array<i64: 8, 128>}, {pipeline_mode = #tpu.pipeline_mode<synchronous>, transform_indices = @transform_1, window_bounds = array<i64: 128, 128>}, {pipeline_mode = #tpu.pipeline_mode<synchronous>, transform_indices = @transform_2, window_bounds = array<i64: 1, 128>}, {pipeline_mode = #tpu.pipeline_mode<synchronous>, transform_indices = @transform_3, window_bounds = array<i64: 128, 128>}, {pipeline_mode = #tpu.pipeline_mode<synchronous>, transform_indices = @transform_4, window_bounds = array<i64: 1, 128>}, {pipeline_mode = #tpu.pipeline_mode<synchronous>, transform_indices = @transform_5, window_bounds = array<i64: 128, 128>}, {pipeline_mode = #tpu.pipeline_mode<synchronous>, transform_indices = @transform_6, window_bounds = array<i64: 1, 128>}, {transform_indices = @transform_7, window_bounds = array<i64: 8, 128>}]} {
    %c0_i32 = arith.constant 0 : i32
    %0 = arith.cmpi eq, %arg1, %c0_i32 : i32
    %1 = arith.extui %0 : i1 to i32
    %c0_i32_0 = arith.constant 0 : i32
    %2 = arith.cmpi ne, %1, %c0_i32_0 : i32
    scf.if %2 {
      %c0_8 = arith.constant 0 : index
      %c0_9 = arith.constant 0 : index
      %10 = vector.load %arg2[%c0_8, %c0_9] : memref<8x128xf32, #tpu.memory_space<vmem>>, vector<8x128xf32>
      %c0_10 = arith.constant 0 : index
      %c0_11 = arith.constant 0 : index
      %11 = vector.load %arg3[%c0_10, %c0_11] : memref<128x128xf32, #tpu.memory_space<vmem>>, vector<128x128xf32>
      %c0_12 = arith.constant 0 : index
      %c0_13 = arith.constant 0 : index
      %12 = vector.load %arg4[%c0_12, %c0_13] : memref<1x128xf32, #tpu.memory_space<vmem>>, vector<1x128xf32>
      %cst_14 = arith.constant dense<0.000000e+00> : vector<8x128xf32>
      %13 = tpu.matmul %10, %11, %cst_14 {dimension_numbers = #tpu.dot_dimension_numbers<[1], [0], [0], [1], [0, 0, 1, 1], [], []>} : vector<8x128xf32>, vector<128x128xf32>, vector<8x128xf32> -> vector<8x128xf32>
      %14 = vector.broadcast %12 : vector<1x128xf32> to vector<8x128xf32>
      %15 = arith.addf %13, %14 : vector<8x128xf32>
      %c0_15 = arith.constant 0 : index
      %c0_16 = arith.constant 0 : index
      %16 = vector.load %arg5[%c0_15, %c0_16] : memref<128x128xf32, #tpu.memory_space<vmem>>, vector<128x128xf32>
      %c0_17 = arith.constant 0 : index
      %c0_18 = arith.constant 0 : index
      %17 = vector.load %arg6[%c0_17, %c0_18] : memref<1x128xf32, #tpu.memory_space<vmem>>, vector<1x128xf32>
      %cst_19 = arith.constant dense<0.000000e+00> : vector<8x128xf32>
      %18 = tpu.matmul %15, %16, %cst_19 {dimension_numbers = #tpu.dot_dimension_numbers<[1], [0], [0], [1], [0, 0, 1, 1], [], []>} : vector<8x128xf32>, vector<128x128xf32>, vector<8x128xf32> -> vector<8x128xf32>
      %19 = vector.broadcast %17 : vector<1x128xf32> to vector<8x128xf32>
      %20 = arith.addf %18, %19 : vector<8x128xf32>
      %c0_20 = arith.constant 0 : index
      %c0_21 = arith.constant 0 : index
      %21 = vector.load %arg10[%c0_20, %c0_21] : memref<8x128xf32, #tpu.memory_space<vmem>>, vector<8x128xf32>
      tpu.vector_store %arg10[%c0_20, %c0_21], %20 {strides = array<i32>} : memref<8x128xf32, #tpu.memory_space<vmem>>, vector<8x128xf32>,
    } else {
    }
    %c0 = arith.constant 0 : index
    %c0_1 = arith.constant 0 : index
    %3 = vector.load %arg7[%c0, %c0_1] : memref<128x128xf32, #tpu.memory_space<vmem>>, vector<128x128xf32>
    %c0_2 = arith.constant 0 : index
    %c0_3 = arith.constant 0 : index
    %4 = vector.load %arg8[%c0_2, %c0_3] : memref<1x128xf32, #tpu.memory_space<vmem>>, vector<1x128xf32>
    %c0_4 = arith.constant 0 : index
    %c0_5 = arith.constant 0 : index
    %5 = vector.load %arg10[%c0_4, %c0_5] : memref<8x128xf32, #tpu.memory_space<vmem>>, vector<8x128xf32>
    %cst = arith.constant dense<0.000000e+00> : vector<8x128xf32>
    %6 = tpu.matmul %5, %3, %cst {dimension_numbers = #tpu.dot_dimension_numbers<[1], [0], [0], [1], [0, 0, 1, 1], [], []>} : vector<8x128xf32>, vector<128x128xf32>, vector<8x128xf32> -> vector<8x128xf32>
    %7 = vector.broadcast %4 : vector<1x128xf32> to vector<8x128xf32>
    %8 = arith.addf %6, %7 : vector<8x128xf32>
    %c0_6 = arith.constant 0 : index
    %c0_7 = arith.constant 0 : index
    %9 = vector.load %arg9[%c0_6, %c0_7] : memref<8x128xf32, #tpu.memory_space<vmem>>, vector<8x128xf32>
    tpu.vector_store %arg9[%c0_6, %c0_7], %8 {strides = array<i32>} : memref<8x128xf32, #tpu.memory_space<vmem>>, vector<8x128xf32>,
    return
  }
  func.func @transform_0(%arg0: i32, %arg1: i32) -> (i32, i32) {
    %c0_i32 = arith.constant 0 : i32
    %c0_i32_0 = arith.constant 0 : i32
    return %arg0, %c0_i32 : i32, i32
  }
  func.func @transform_1(%arg0: i32, %arg1: i32) -> (i32, i32) {
    %c0_i32 = arith.constant 0 : i32
    %c0_i32_0 = arith.constant 0 : i32
    %c0_i32_1 = arith.constant 0 : i32
    return %c0_i32, %c0_i32_0 : i32, i32
  }
  func.func @transform_2(%arg0: i32, %arg1: i32) -> (i32, i32) {
    %c0_i32 = arith.constant 0 : i32
    %c0_i32_0 = arith.constant 0 : i32
    %c0_i32_1 = arith.constant 0 : i32
    return %c0_i32, %c0_i32_0 : i32, i32
  }
  func.func @transform_3(%arg0: i32, %arg1: i32) -> (i32, i32) {
    %c0_i32 = arith.constant 0 : i32
    %c0_i32_0 = arith.constant 0 : i32
    %c0_i32_1 = arith.constant 0 : i32
    return %c0_i32, %c0_i32_0 : i32, i32
  }
  func.func @transform_4(%arg0: i32, %arg1: i32) -> (i32, i32) {
    %c0_i32 = arith.constant 0 : i32
    %c0_i32_0 = arith.constant 0 : i32
    %c0_i32_1 = arith.constant 0 : i32
    return %c0_i32, %c0_i32_0 : i32, i32
  }
  func.func @transform_5(%arg0: i32, %arg1: i32) -> (i32, i32) {
    %c0_i32 = arith.constant 0 : i32
    %c0_i32_0 = arith.constant 0 : i32
    return %c0_i32, %arg1 : i32, i32
  }
  func.func @transform_6(%arg0: i32, %arg1: i32) -> (i32, i32) {
    %c0_i32 = arith.constant 0 : i32
    %c0_i32_0 = arith.constant 0 : i32
    return %c0_i32, %arg1 : i32, i32
  }
  func.func @transform_7(%arg0: i32, %arg1: i32) -> (i32, i32) {
    %c0_i32 = arith.constant 0 : i32
    return %arg0, %arg1 : i32, i32
  }
}

module attributes {stable_mosaic.version = 11 : i64} {
  func.func @kernel(%arg0: i32, %arg1: i32, %arg2: memref<8x128xf32, #tpu.memory_space<vmem>>, %arg3: memref<128x128xf32, #tpu.memory_space<vmem>>, %arg4: memref<1x128xf32, #tpu.memory_space<vmem>>, %arg5: memref<128x128xf32, #tpu.memory_space<vmem>>, %arg6: memref<1x128xf32, #tpu.memory_space<vmem>>, %arg7: memref<128x128xf32, #tpu.memory_space<vmem>>, %arg8: memref<1x128xf32, #tpu.memory_space<vmem>>, %arg9: memref<8x128xf32, #tpu.memory_space<vmem>>, %arg10: memref<8x128xf32, #tpu.memory_space<vmem>>) attributes {dimension_semantics = [#tpu.dimension_semantics<parallel>, #tpu.dimension_semantics<arbitrary>], iteration_bounds = array<i64: 1, 1>, scalar_prefetch = 0 : i64, scratch_operands = 1 : i64, tpu.core_type = #tpu.core_type<tc>, window_params = [{transform_indices = @transform_0, window_bounds = array<i64: 8, 128>}, {pipeline_mode = #tpu.pipeline_mode<synchronous>, transform_indices = @transform_1, window_bounds = array<i64: 128, 128>}, {pipeline_mode = #tpu.pipeline_mode<synchronous>, transform_indices = @transform_2, window_bounds = array<i64: 1, 128>}, {pipeline_mode = #tpu.pipeline_mode<synchronous>, transform_indices = @transform_3, window_bounds = array<i64: 128, 128>}, {pipeline_mode = #tpu.pipeline_mode<synchronous>, transform_indices = @transform_4, window_bounds = array<i64: 1, 128>}, {transform_indices = @transform_5, window_bounds = array<i64: 128, 128>}, {transform_indices = @transform_6, window_bounds = array<i64: 1, 128>}, {transform_indices = @transform_7, window_bounds = array<i64: 8, 128>}]} {
    %c0_i32 = arith.constant 0 : i32
    %0 = arith.cmpi eq, %arg1, %c0_i32 : i32
    %1 = arith.extui %0 : i1 to i32
    %c0_i32_0 = arith.constant 0 : i32
    %2 = arith.cmpi ne, %1, %c0_i32_0 : i32
    scf.if %2 {
      %c0_8 = arith.constant 0 : index
      %c0_9 = arith.constant 0 : index
      %10 = vector.load %arg2[%c0_8, %c0_9] : memref<8x128xf32, #tpu.memory_space<vmem>>, vector<8x128xf32>
      %c0_10 = arith.constant 0 : index
      %c0_11 = arith.constant 0 : index
      %11 = vector.load %arg3[%c0_10, %c0_11] : memref<128x128xf32, #tpu.memory_space<vmem>>, vector<128x128xf32>
      %c0_12 = arith.constant 0 : index
      %c0_13 = arith.constant 0 : index
      %12 = vector.load %arg4[%c0_12, %c0_13] : memref<1x128xf32, #tpu.memory_space<vmem>>, vector<1x128xf32>
      %cst_14 = arith.constant dense<0.000000e+00> : vector<8x128xf32>
      %13 = tpu.matmul %10, %11, %cst_14 {dimension_numbers = #tpu.dot_dimension_numbers<[1], [0], [0], [1], [0, 0, 1, 1], [], []>} : vector<8x128xf32>, vector<128x128xf32>, vector<8x128xf32> -> vector<8x128xf32>
      %14 = vector.broadcast %12 : vector<1x128xf32> to vector<8x128xf32>
      %15 = arith.addf %13, %14 : vector<8x128xf32>
      %c0_15 = arith.constant 0 : index
      %c0_16 = arith.constant 0 : index
      %16 = vector.load %arg5[%c0_15, %c0_16] : memref<128x128xf32, #tpu.memory_space<vmem>>, vector<128x128xf32>
      %c0_17 = arith.constant 0 : index
      %c0_18 = arith.constant 0 : index
      %17 = vector.load %arg6[%c0_17, %c0_18] : memref<1x128xf32, #tpu.memory_space<vmem>>, vector<1x128xf32>
      %cst_19 = arith.constant dense<0.000000e+00> : vector<8x128xf32>
      %18 = tpu.matmul %15, %16, %cst_19 {dimension_numbers = #tpu.dot_dimension_numbers<[1], [0], [0], [1], [0, 0, 1, 1], [], []>} : vector<8x128xf32>, vector<128x128xf32>, vector<8x128xf32> -> vector<8x128xf32>
      %19 = vector.broadcast %17 : vector<1x128xf32> to vector<8x128xf32>
      %20 = arith.addf %18, %19 : vector<8x128xf32>
      %c0_20 = arith.constant 0 : index
      %c0_21 = arith.constant 0 : index
      %21 = vector.load %arg10[%c0_20, %c0_21] : memref<8x128xf32, #tpu.memory_space<vmem>>, vector<8x128xf32>
      tpu.vector_store %arg10[%c0_20, %c0_21], %20 {strides = array<i32>} : memref<8x128xf32, #tpu.memory_space<vmem>>, vector<8x128xf32>,
    } else {
    }
    %c0 = arith.constant 0 : index
    %c0_1 = arith.constant 0 : index
    %3 = vector.load %arg7[%c0, %c0_1] : memref<128x128xf32, #tpu.memory_space<vmem>>, vector<128x128xf32>
    %c0_2 = arith.constant 0 : index
    %c0_3 = arith.constant 0 : index
    %4 = vector.load %arg8[%c0_2, %c0_3] : memref<1x128xf32, #tpu.memory_space<vmem>>, vector<1x128xf32>
    %c0_4 = arith.constant 0 : index
    %c0_5 = arith.constant 0 : index
    %5 = vector.load %arg10[%c0_4, %c0_5] : memref<8x128xf32, #tpu.memory_space<vmem>>, vector<8x128xf32>
    %cst = arith.constant dense<0.000000e+00> : vector<8x128xf32>
    %6 = tpu.matmul %5, %3, %cst {dimension_numbers = #tpu.dot_dimension_numbers<[1], [0], [0], [1], [0, 0, 1, 1], [], []>} : vector<8x128xf32>, vector<128x128xf32>, vector<8x128xf32> -> vector<8x128xf32>
    %7 = vector.broadcast %4 : vector<1x128xf32> to vector<8x128xf32>
    %8 = arith.addf %6, %7 : vector<8x128xf32>
    %c0_6 = arith.constant 0 : index
    %c0_7 = arith.constant 0 : index
    %9 = vector.load %arg9[%c0_6, %c0_7] : memref<8x128xf32, #tpu.memory_space<vmem>>, vector<8x128xf32>
    tpu.vector_store %arg9[%c0_6, %c0_7], %8 {strides = array<i32>} : memref<8x128xf32, #tpu.memory_space<vmem>>, vector<8x128xf32>,
    return
  }
  func.func @transform_0(%arg0: i32, %arg1: i32) -> (i32, i32) {
    %c0_i32 = arith.constant 0 : i32
    %c0_i32_0 = arith.constant 0 : i32
    return %arg0, %c0_i32 : i32, i32
  }
  func.func @transform_1(%arg0: i32, %arg1: i32) -> (i32, i32) {
    %c0_i32 = arith.constant 0 : i32
    %c0_i32_0 = arith.constant 0 : i32
    %c0_i32_1 = arith.constant 0 : i32
    return %c0_i32, %c0_i32_0 : i32, i32
  }
  func.func @transform_2(%arg0: i32, %arg1: i32) -> (i32, i32) {
    %c0_i32 = arith.constant 0 : i32
    %c0_i32_0 = arith.constant 0 : i32
    %c0_i32_1 = arith.constant 0 : i32
    return %c0_i32, %c0_i32_0 : i32, i32
  }
  func.func @transform_3(%arg0: i32, %arg1: i32) -> (i32, i32) {
    %c0_i32 = arith.constant 0 : i32
    %c0_i32_0 = arith.constant 0 : i32
    %c0_i32_1 = arith.constant 0 : i32
    return %c0_i32, %c0_i32_0 : i32, i32
  }
  func.func @transform_4(%arg0: i32, %arg1: i32) -> (i32, i32) {
    %c0_i32 = arith.constant 0 : i32
    %c0_i32_0 = arith.constant 0 : i32
    %c0_i32_1 = arith.constant 0 : i32
    return %c0_i32, %c0_i32_0 : i32, i32
  }
  func.func @transform_5(%arg0: i32, %arg1: i32) -> (i32, i32) {
    %c0_i32 = arith.constant 0 : i32
    %c0_i32_0 = arith.constant 0 : i32
    return %c0_i32, %arg1 : i32, i32
  }
  func.func @transform_6(%arg0: i32, %arg1: i32) -> (i32, i32) {
    %c0_i32 = arith.constant 0 : i32
    %c0_i32_0 = arith.constant 0 : i32
    return %c0_i32, %arg1 : i32, i32
  }
  func.func @transform_7(%arg0: i32, %arg1: i32) -> (i32, i32) {
    %c0_i32 = arith.constant 0 : i32
    return %arg0, %arg1 : i32, i32
  }
}

</mosaic_0001>

<llo_original>
// kernel: tpu_custom_call.1
$region0: #{tpu_custom_call.1}
  #allocation0 [shape = 'u32[]', space=smem, size = 0x4, offset = 0x4, fixed_abs, tag = 'smem constant byte address 0x4 - core index']
  #allocation1 [shape = 'u32[144,128]{1,0:T(1,128)}', space=vmem, size = 0x12000, scoped, tag = 'internal scratch']
  #allocation2 [shape = 'f32[8,128]{1,0:T(8,128)}', space=vmem, size = 0x1000, scoped, tag = 'scratch operand']
  %s0 = inlined_call_operand.hbm [shape: f32[8,128], index: 0, kind: input, shape index: {}]
  %s1 = inlined_call_operand.hbm [shape: f32[128,128], index: 1, kind: input, shape index: {}]
  %s2 = inlined_call_operand.vmem [shape: f32[1,128], index: 2, kind: input, shape index: {}]
  %s3 = inlined_call_operand.hbm [shape: f32[128,128], index: 3, kind: input, shape index: {}]
  %s4 = inlined_call_operand.vmem [shape: f32[1,128], index: 4, kind: input, shape index: {}]
  %s5 = inlined_call_operand.hbm [shape: f32[128,128], index: 5, kind: input, shape index: {}]
  %s6 = inlined_call_operand.vmem [shape: f32[1,128], index: 6, kind: input, shape index: {}]
  %s7 = inlined_call_operand.hbm [shape: f32[8,128], index: 7, kind: output, shape index: {}]
  %s8 = sld [smem:[#allocation0]]
  $region58: #{tpu_custom_call.1} parent=0
    _
  %s10 = ssub.s32 1, %s8
  %s11 = scalar_select 0, %s10, %s8
  $region1: #{tpu_custom_call.1} parent=0
    #allocation3 [shape = 'u8[4096]{0}', space=vmem, size = 0x1000, scoped, tag = 'input window, operand 0, single buffered']
    #allocation4 [shape = 's32[1]{0}', space=sflag, size = 0x4, scoped, tag = 'scoped memory for tpu_custom_call.1']
    #allocation5 [shape = 's32[1]{0}', space=sflag, size = 0x4, scoped, tag = 'scoped memory for tpu_custom_call.1']
    #allocation6 [shape = 'u8[65536]{0}', space=vmem, size = 0x10000, scoped, tag = 'input window, operand 1, single buffered']
    #allocation7 [shape = 's32[1]{0}', space=sflag, size = 0x4, scoped, tag = 'scoped memory for tpu_custom_call.1']
    #allocation8 [shape = 'u8[65536]{0}', space=vmem, size = 0x10000, scoped, tag = 'input window, operand 3, single buffered']
    #allocation9 [shape = 'u8[65536]{0}', space=vmem, size = 0x10000, scoped, tag = 'input window, operand 5, single buffered']
    #allocation10 [shape = 's32[1]{0}', space=sflag, size = 0x4, scoped, tag = 'scoped memory for tpu_custom_call.1']
    #allocation11 [shape = 'u8[4096]{0}', space=vmem, size = 0x1000, scoped, tag = 'output window, operand 0, single buffered']
    %12 = vsyncpa [#allocation4], 0
    %13 = vsyncpa [#allocation7], 0
    %14 = vsyncpa [#allocation10], 0
    %15 = vsyncpa [#allocation5], 0
    // Predicated region
    $region2: #{tpu_custom_call.1} parent=1 // pred_check
      _
    $region3: #{tpu_custom_call.1} parent=1 // pred_check_branch
      %17 = sbr.rel (0) target = $region5
    $region4: #{tpu_custom_call.1} parent=1 // pred_region
      %s19 = ssub.s32 128, 128
      %20 = vsyncadd [#allocation4], %s19
      %s22 = sshll.u32 [#allocation3], 4
      %s23 = int_to_ptr.vmem [resolvable:$true] %s22
      %25 = dma.hbm_to_vmem [thread:$0]  %s0, 128, %s23, [#allocation4]
    $region5: #{tpu_custom_call.1} parent=1 // pred_fallthru
      _
    // Predicated region
    $region6: #{tpu_custom_call.1} parent=1 // pred_check
      _
    $region7: #{tpu_custom_call.1} parent=1 // pred_check_branch
      %27 = sbr.rel (0) target = $region9
    $region8: #{tpu_custom_call.1} parent=1 // pred_region
      %s29 = ssub.s32 2048, 2048
      %30 = vsyncadd [#allocation7], %s29
      %s31 = sshll.u32 [#allocation6], 4
      %s32 = int_to_ptr.vmem [resolvable:$true] %s31
      %37 = dma.hbm_to_vmem [thread:$0]  %s1, 2048, %s32, [#allocation7], 128, 128, 8
    $region9: #{tpu_custom_call.1} parent=1 // pred_fallthru
      _
    // Predicated region
    $region10: #{tpu_custom_call.1} parent=1 // pred_check
      _
    $region11: #{tpu_custom_call.1} parent=1 // pred_check_branch
      %39 = sbr.rel (0) target = $region13
    $region12: #{tpu_custom_call.1} parent=1 // pred_region
      _
    $region13: #{tpu_custom_call.1} parent=1 // pred_fallthru
      _
    // Predicated region
    $region14: #{tpu_custom_call.1} parent=1 // pred_check
      _
    $region15: #{tpu_custom_call.1} parent=1 // pred_check_branch
      %41 = sbr.rel (0) target = $region17
    $region16: #{tpu_custom_call.1} parent=1 // pred_region
      %s43 = ssub.s32 2048, 2048
      %44 = vsyncadd [#allocation7], %s43
      %s45 = sshll.u32 [#allocation8], 4
      %s46 = int_to_ptr.vmem [resolvable:$true] %s45
      %51 = dma.hbm_to_vmem [thread:$0]  %s3, 2048, %s46, [#allocation7], 128, 128, 8
    $region17: #{tpu_custom_call.1} parent=1 // pred_fallthru
      _
    // Predicated region
    $region18: #{tpu_custom_call.1} parent=1 // pred_check
      _
    $region19: #{tpu_custom_call.1} parent=1 // pred_check_branch
      %53 = sbr.rel (0) target = $region21
    $region20: #{tpu_custom_call.1} parent=1 // pred_region
      _
    $region21: #{tpu_custom_call.1} parent=1 // pred_fallthru
      _
    // Predicated region
    $region22: #{tpu_custom_call.1} parent=1 // pred_check
      _
    $region23: #{tpu_custom_call.1} parent=1 // pred_check_branch
      %55 = sbr.rel (0) target = $region25
    $region24: #{tpu_custom_call.1} parent=1 // pred_region
      %s57 = ssub.s32 2048, 2048
      %58 = vsyncadd [#allocation10], %s57
      %s59 = sshll.u32 [#allocation9], 4
      %s60 = int_to_ptr.vmem [resolvable:$true] %s59
      %65 = dma.hbm_to_vmem [thread:$0]  %s5, 2048, %s60, [#allocation10], 128, 128, 8
    $region25: #{tpu_custom_call.1} parent=1 // pred_fallthru
      _
    // Predicated region
    $region26: #{tpu_custom_call.1} parent=1 // pred_check
      _
    $region27: #{tpu_custom_call.1} parent=1 // pred_check_branch
      %67 = sbr.rel (0) target = $region29
    $region28: #{tpu_custom_call.1} parent=1 // pred_region
      _
    $region29: #{tpu_custom_call.1} parent=1 // pred_fallthru
      _
    // Predicated region
    $region30: #{tpu_custom_call.1} parent=1 // pred_check
      _
    $region31: #{tpu_custom_call.1} parent=1 // pred_check_branch
      %69 = sbr.rel (0) target = $region33
    $region32: #{tpu_custom_call.1} parent=1 // pred_region
      %70 = dma.done [#allocation4], 128
    $region33: #{tpu_custom_call.1} parent=1 // pred_fallthru
      _
    // Predicated region
    $region34: #{tpu_custom_call.1} parent=1 // pred_check
      _
    $region35: #{tpu_custom_call.1} parent=1 // pred_check_branch
      %72 = sbr.rel (0) target = $region37
    $region36: #{tpu_custom_call.1} parent=1 // pred_region
      %73 = dma.done [#allocation7], 2048
    $region37: #{tpu_custom_call.1} parent=1 // pred_fallthru
      _
    // Predicated region
    $region38: #{tpu_custom_call.1} parent=1 // pred_check
      _
    $region39: #{tpu_custom_call.1} parent=1 // pred_check_branch
      %75 = sbr.rel (0) target = $region41
    $region40: #{tpu_custom_call.1} parent=1 // pred_region
      %76 = dma.done [#allocation7], 2048
    $region41: #{tpu_custom_call.1} parent=1 // pred_fallthru
      _
    // Predicated region
    $region42: #{tpu_custom_call.1} parent=1 // pred_check
      _
    $region43: #{tpu_custom_call.1} parent=1 // pred_check_branch
      %78 = sbr.rel (0) target = $region45
    $region44: #{tpu_custom_call.1} parent=1 // pred_region
      %79 = dma.done [#allocation10], 2048
    $region45: #{tpu_custom_call.1} parent=1 // pred_fallthru
      _
    %p80 = scmp.eq.s32.totalorder 0, 0
    // Predicated region
    $region46: #{tpu_custom_call.1} parent=1 // pred_check
      %p81 = pneg %p80
    $region47: #{tpu_custom_call.1} parent=1 // pred_check_branch
      %83 = sbr.rel (%p81) target = $region49
    $region48: #{tpu_custom_call.1} parent=1 // pred_region
      %v84 = vld [vmem:[#allocation3] sm:$0xff]
      %v85 = vld [vmem:[#allocation6] sm:$0xff]
      %v86 = vld [vmem:[#allocation6 + $0x8] sm:$0xff]
      %v87 = vld [vmem:[#allocation6 + $0x10] sm:$0xff]
      %v88 = vld [vmem:[#allocation6 + $0x18] sm:$0xff]
      %v89 = vld [vmem:[#allocation6 + $0x20] sm:$0xff]
      %v90 = vld [vmem:[#allocation6 + $0x28] sm:$0xff]
      %v91 = vld [vmem:[#allocation6 + $0x30] sm:$0xff]
      %v92 = vld [vmem:[#allocation6 + $0x38] sm:$0xff]
      %v93 = vld [vmem:[#allocation6 + $0x40] sm:$0xff]
      %v94 = vld [vmem:[#allocation6 + $0x48] sm:$0xff]
      %v95 = vld [vmem:[#allocation6 + $0x50] sm:$0xff]
      %v96 = vld [vmem:[#allocation6 + $0x58] sm:$0xff]
      %v97 = vld [vmem:[#allocation6 + $0x60] sm:$0xff]
      %v98 = vld [vmem:[#allocation6 + $0x68] sm:$0xff]
      %v99 = vld [vmem:[#allocation6 + $0x70] sm:$0xff]
      %v100 = vld [vmem:[#allocation6 + $0x78] sm:$0xff]
      %v101 = vld [vmem:[%s2] sm:$0x1]
      %v103 = vlaneseq
      %v104 = vshrl.u32 %v103, 7
      %v105 = vsub.s32 0, %v104
      %v106 = vrot.slane %v101, %v105
      %108 = vmatprep.subr.mxu0 0.0
      %109 = vmatpush1.msra.mxu0 %v100
      %110 = vmatprep.subr.mxu0 0.0
      %111 = vmatpush1.msra.mxu0 %v99
      %112 = vmatprep.subr.mxu0 0.0
      %113 = vmatpush1.msra.mxu0 %v98
      %114 = vmatprep.subr.mxu0 0.0
      %115 = vmatpush1.msra.mxu0 %v97
      %116 = vmatprep.subr.mxu0 0.0
      %117 = vmatpush1.msra.mxu0 %v96
      %118 = vmatprep.subr.mxu0 0.0
      %119 = vmatpush1.msra.mxu0 %v95
      %120 = vmatprep.subr.mxu0 0.0
      %121 = vmatpush1.msra.mxu0 %v94
      %122 = vmatprep.subr.mxu0 0.0
      %123 = vmatpush1.msra.mxu0 %v93
      %124 = vmatprep.subr.mxu0 0.0
      %125 = vmatpush1.msra.mxu0 %v92
      %126 = vmatprep.subr.mxu0 0.0
      %127 = vmatpush1.msra.mxu0 %v91
      %128 = vmatprep.subr.mxu0 0.0
      %129 = vmatpush1.msra.mxu0 %v90
      %130 = vmatprep.subr.mxu0 0.0
      %131 = vmatpush1.msra.mxu0 %v89
      %132 = vmatprep.subr.mxu0 0.0
      %133 = vmatpush1.msra.mxu0 %v88
      %134 = vmatprep.subr.mxu0 0.0
      %135 = vmatpush1.msra.mxu0 %v87
      %136 = vmatprep.subr.mxu0 0.0
      %137 = vmatpush1.msra.mxu0 %v86
      %138 = vmatprep.subr.mxu0 0.0
      %139 = vmatpush1.msra.mxu0 %v85
      %140 = vmatprep.subr.mxu0 0.0
      %141 = vmatpush2.msra.mxu0 0.0
      %142 = vmatprep.subr.mxu0 0.0
      %143 = vmatpush2.msra.mxu0 0.0
      %144 = vmatprep.subr.mxu0 0.0
      %145 = vmatpush2.msra.mxu0 0.0
      %146 = vmatprep.subr.mxu0 0.0
      %147 = vmatpush2.msra.mxu0 0.0
      %148 = vmatprep.subr.mxu0 0.0
      %149 = vmatpush2.msra.mxu0 0.0
      %150 = vmatprep.subr.mxu0 0.0
      %151 = vmatpush2.msra.mxu0 0.0
      %152 = vmatprep.subr.mxu0 0.0
      %153 = vmatpush2.msra.mxu0 0.0
      %154 = vmatprep.subr.mxu0 0.0
      %155 = vmatpush2.msra.mxu0 0.0
      %156 = vmatprep.subr.mxu0 0.0
      %157 = vmatpush2.msra.mxu0 0.0
      %158 = vmatprep.subr.mxu0 0.0
      %159 = vmatpush2.msra.mxu0 0.0
      %160 = vmatprep.subr.mxu0 0.0
      %161 = vmatpush2.msra.mxu0 0.0
      %162 = vmatprep.subr.mxu0 0.0
      %163 = vmatpush2.msra.mxu0 0.0
      %164 = vmatprep.subr.mxu0 0.0
      %165 = vmatpush2.msra.mxu0 0.0
      %166 = vmatprep.subr.mxu0 0.0
      %167 = vmatpush2.msra.mxu0 0.0
      %168 = vmatprep.subr.mxu0 0.0
      %169 = vmatpush2.msra.mxu0 0.0
      %170 = vmatprep.subr.mxu0 0.0
      %171 = vmatpush2.msra.mxu0 0.0
      %172 = vmatprep.mubr.f32.mxu0 0.0
      %173 = vmatmul.mubr.f32.gmra.mxu0 %v84
      %v174 = vpop.f32.mrf.mxu0
      %v175 = vadd.f32 %v106, %v174
      %v176 = vpop.f32.mrf.mxu0
      %177 = vdwg.mxu0
      %v178 = vld [vmem:[#allocation8] sm:$0xff]
      %v179 = vld [vmem:[#allocation8 + $0x8] sm:$0xff]
      %v180 = vld [vmem:[#allocation8 + $0x10] sm:$0xff]
      %v181 = vld [vmem:[#allocation8 + $0x18] sm:$0xff]
      %v182 = vld [vmem:[#allocation8 + $0x20] sm:$0xff]
      %v183 = vld [vmem:[#allocation8 + $0x28] sm:$0xff]
      %v184 = vld [vmem:[#allocation8 + $0x30] sm:$0xff]
      %v185 = vld [vmem:[#allocation8 + $0x38] sm:$0xff]
      %v186 = vld [vmem:[#allocation8 + $0x40] sm:$0xff]
      %v187 = vld [vmem:[#allocation8 + $0x48] sm:$0xff]
      %v188 = vld [vmem:[#allocation8 + $0x50] sm:$0xff]
      %v189 = vld [vmem:[#allocation8 + $0x58] sm:$0xff]
      %v190 = vld [vmem:[#allocation8 + $0x60] sm:$0xff]
      %v191 = vld [vmem:[#allocation8 + $0x68] sm:$0xff]
      %v192 = vld [vmem:[#allocation8 + $0x70] sm:$0xff]
      %v193 = vld [vmem:[#allocation8 + $0x78] sm:$0xff]
      %v194 = vld [vmem:[%s4] sm:$0x1]
      %v196 = vlaneseq
      %v197 = vshrl.u32 %v196, 7
      %v198 = vsub.s32 0, %v197
      %v199 = vrot.slane %v194, %v198
      %201 = vmatprep.subr.mxu0 0.0
      %202 = vmatpush1.msra.mxu0 %v193
      %203 = vmatprep.subr.mxu0 0.0
      %204 = vmatpush1.msra.mxu0 %v192
      %205 = vmatprep.subr.mxu0 0.0
      %206 = vmatpush1.msra.mxu0 %v191
      %207 = vmatprep.subr.mxu0 0.0
      %208 = vmatpush1.msra.mxu0 %v190
      %209 = vmatprep.subr.mxu0 0.0
      %210 = vmatpush1.msra.mxu0 %v189
      %211 = vmatprep.subr.mxu0 0.0
      %212 = vmatpush1.msra.mxu0 %v188
      %213 = vmatprep.subr.mxu0 0.0
      %214 = vmatpush1.msra.mxu0 %v187
      %215 = vmatprep.subr.mxu0 0.0
      %216 = vmatpush1.msra.mxu0 %v186
      %217 = vmatprep.subr.mxu0 0.0
      %218 = vmatpush1.msra.mxu0 %v185
      %219 = vmatprep.subr.mxu0 0.0
      %220 = vmatpush1.msra.mxu0 %v184
      %221 = vmatprep.subr.mxu0 0.0
      %222 = vmatpush1.msra.mxu0 %v183
      %223 = vmatprep.subr.mxu0 0.0
      %224 = vmatpush1.msra.mxu0 %v182
      %225 = vmatprep.subr.mxu0 0.0
      %226 = vmatpush1.msra.mxu0 %v181
      %227 = vmatprep.subr.mxu0 0.0
      %228 = vmatpush1.msra.mxu0 %v180
      %229 = vmatprep.subr.mxu0 0.0
      %230 = vmatpush1.msra.mxu0 %v179
      %231 = vmatprep.subr.mxu0 0.0
      %232 = vmatpush1.msra.mxu0 %v178
      %233 = vmatprep.subr.mxu0 0.0
      %234 = vmatpush2.msra.mxu0 0.0
      %235 = vmatprep.subr.mxu0 0.0
      %236 = vmatpush2.msra.mxu0 0.0
      %237 = vmatprep.subr.mxu0 0.0
      %238 = vmatpush2.msra.mxu0 0.0
      %239 = vmatprep.subr.mxu0 0.0
      %240 = vmatpush2.msra.mxu0 0.0
      %241 = vmatprep.subr.mxu0 0.0
      %242 = vmatpush2.msra.mxu0 0.0
      %243 = vmatprep.subr.mxu0 0.0
      %244 = vmatpush2.msra.mxu0 0.0
      %245 = vmatprep.subr.mxu0 0.0
      %246 = vmatpush2.msra.mxu0 0.0
      %247 = vmatprep.subr.mxu0 0.0
      %248 = vmatpush2.msra.mxu0 0.0
      %249 = vmatprep.subr.mxu0 0.0
      %250 = vmatpush2.msra.mxu0 0.0
      %251 = vmatprep.subr.mxu0 0.0
      %252 = vmatpush2.msra.mxu0 0.0
      %253 = vmatprep.subr.mxu0 0.0
      %254 = vmatpush2.msra.mxu0 0.0
      %255 = vmatprep.subr.mxu0 0.0
      %256 = vmatpush2.msra.mxu0 0.0
      %257 = vmatprep.subr.mxu0 0.0
      %258 = vmatpush2.msra.mxu0 0.0
      %259 = vmatprep.subr.mxu0 0.0
      %260 = vmatpush2.msra.mxu0 0.0
      %261 = vmatprep.subr.mxu0 0.0
      %262 = vmatpush2.msra.mxu0 0.0
      %263 = vmatprep.subr.mxu0 0.0
      %264 = vmatpush2.msra.mxu0 0.0
      %265 = vmatprep.mubr.f32.mxu0 0.0
      %266 = vmatmul.mubr.f32.gmra.mxu0 %v175
      %v267 = vpop.f32.mrf.mxu0
      %v268 = vadd.f32 %v199, %v267
      %v269 = vpop.f32.mrf.mxu0
      %270 = vdwg.mxu0
      %271 = vst [vmem:[#allocation2] sm:$0xff] %v268
    $region49: #{tpu_custom_call.1} parent=1 // pred_fallthru
      _
    %v272 = vld [vmem:[#allocation9] sm:$0xff]
    %v273 = vld [vmem:[#allocation9 + $0x8] sm:$0xff]
    %v274 = vld [vmem:[#allocation9 + $0x10] sm:$0xff]
    %v275 = vld [vmem:[#allocation9 + $0x18] sm:$0xff]
    %v276 = vld [vmem:[#allocation9 + $0x20] sm:$0xff]
    %v277 = vld [vmem:[#allocation9 + $0x28] sm:$0xff]
    %v278 = vld [vmem:[#allocation9 + $0x30] sm:$0xff]
    %v279 = vld [vmem:[#allocation9 + $0x38] sm:$0xff]
    %v280 = vld [vmem:[#allocation9 + $0x40] sm:$0xff]
    %v281 = vld [vmem:[#allocation9 + $0x48] sm:$0xff]
    %v282 = vld [vmem:[#allocation9 + $0x50] sm:$0xff]
    %v283 = vld [vmem:[#allocation9 + $0x58] sm:$0xff]
    %v284 = vld [vmem:[#allocation9 + $0x60] sm:$0xff]
    %v285 = vld [vmem:[#allocation9 + $0x68] sm:$0xff]
    %v286 = vld [vmem:[#allocation9 + $0x70] sm:$0xff]
    %v287 = vld [vmem:[#allocation9 + $0x78] sm:$0xff]
    %v288 = vld [vmem:[%s6] sm:$0x1]
    %v289 = vld [vmem:[#allocation2] sm:$0xff]
    %v291 = vlaneseq
    %v292 = vshrl.u32 %v291, 7
    %v293 = vsub.s32 0, %v292
    %v294 = vrot.slane %v288, %v293
    %296 = vmatprep.subr.mxu0 0.0
    %297 = vmatpush1.msra.mxu0 %v287
    %298 = vmatprep.subr.mxu0 0.0
    %299 = vmatpush1.msra.mxu0 %v286
    %300 = vmatprep.subr.mxu0 0.0
    %301 = vmatpush1.msra.mxu0 %v285
    %302 = vmatprep.subr.mxu0 0.0
    %303 = vmatpush1.msra.mxu0 %v284
    %304 = vmatprep.subr.mxu0 0.0
    %305 = vmatpush1.msra.mxu0 %v283
    %306 = vmatprep.subr.mxu0 0.0
    %307 = vmatpush1.msra.mxu0 %v282
    %308 = vmatprep.subr.mxu0 0.0
    %309 = vmatpush1.msra.mxu0 %v281
    %310 = vmatprep.subr.mxu0 0.0
    %311 = vmatpush1.msra.mxu0 %v280
    %312 = vmatprep.subr.mxu0 0.0
    %313 = vmatpush1.msra.mxu0 %v279
    %314 = vmatprep.subr.mxu0 0.0
    %315 = vmatpush1.msra.mxu0 %v278
    %316 = vmatprep.subr.mxu0 0.0
    %317 = vmatpush1.msra.mxu0 %v277
    %318 = vmatprep.subr.mxu0 0.0
    %319 = vmatpush1.msra.mxu0 %v276
    %320 = vmatprep.subr.mxu0 0.0
    %321 = vmatpush1.msra.mxu0 %v275
    %322 = vmatprep.subr.mxu0 0.0
    %323 = vmatpush1.msra.mxu0 %v274
    %324 = vmatprep.subr.mxu0 0.0
    %325 = vmatpush1.msra.mxu0 %v273
    %326 = vmatprep.subr.mxu0 0.0
    %327 = vmatpush1.msra.mxu0 %v272
    %328 = vmatprep.subr.mxu0 0.0
    %329 = vmatpush2.msra.mxu0 0.0
    %330 = vmatprep.subr.mxu0 0.0
    %331 = vmatpush2.msra.mxu0 0.0
    %332 = vmatprep.subr.mxu0 0.0
    %333 = vmatpush2.msra.mxu0 0.0
    %334 = vmatprep.subr.mxu0 0.0
    %335 = vmatpush2.msra.mxu0 0.0
    %336 = vmatprep.subr.mxu0 0.0
    %337 = vmatpush2.msra.mxu0 0.0
    %338 = vmatprep.subr.mxu0 0.0
    %339 = vmatpush2.msra.mxu0 0.0
    %340 = vmatprep.subr.mxu0 0.0
    %341 = vmatpush2.msra.mxu0 0.0
    %342 = vmatprep.subr.mxu0 0.0
    %343 = vmatpush2.msra.mxu0 0.0
    %344 = vmatprep.subr.mxu0 0.0
    %345 = vmatpush2.msra.mxu0 0.0
    %346 = vmatprep.subr.mxu0 0.0
    %347 = vmatpush2.msra.mxu0 0.0
    %348 = vmatprep.subr.mxu0 0.0
    %349 = vmatpush2.msra.mxu0 0.0
    %350 = vmatprep.subr.mxu0 0.0
    %351 = vmatpush2.msra.mxu0 0.0
    %352 = vmatprep.subr.mxu0 0.0
    %353 = vmatpush2.msra.mxu0 0.0
    %354 = vmatprep.subr.mxu0 0.0
    %355 = vmatpush2.msra.mxu0 0.0
    %356 = vmatprep.subr.mxu0 0.0
    %357 = vmatpush2.msra.mxu0 0.0
    %358 = vmatprep.subr.mxu0 0.0
    %359 = vmatpush2.msra.mxu0 0.0
    %360 = vmatprep.mubr.f32.mxu0 0.0
    %361 = vmatmul.mubr.f32.gmra.mxu0 %v289
    %v362 = vpop.f32.mrf.mxu0
    %v363 = vadd.f32 %v294, %v362
    %v364 = vpop.f32.mrf.mxu0
    %365 = vdwg.mxu0
    %366 = vst [vmem:[#allocation11] sm:$0xff] %v363
    // Predicated region
    $region50: #{tpu_custom_call.1} parent=1 // pred_check
      _
    $region51: #{tpu_custom_call.1} parent=1 // pred_check_branch
      %368 = sbr.rel (0) target = $region53
    $region52: #{tpu_custom_call.1} parent=1 // pred_region
      %s370 = ssub.s32 128, 128
      %371 = vsyncadd [#allocation5], %s370
      %s373 = sshll.u32 [#allocation11], 4
      %s374 = int_to_ptr.vmem [resolvable:$true] %s373
      %376 = dma.vmem_to_hbm [thread:$0]  %s374, 128, %s7, [#allocation5]
    $region53: #{tpu_custom_call.1} parent=1 // pred_fallthru
      _
    // Predicated region
    $region54: #{tpu_custom_call.1} parent=1 // pred_check
      _
    $region55: #{tpu_custom_call.1} parent=1 // pred_check_branch
      %378 = sbr.rel (0) target = $region57
    $region56: #{tpu_custom_call.1} parent=1 // pred_region
      %379 = dma.done [#allocation5], 128
    $region57: #{tpu_custom_call.1} parent=1 // pred_fallthru
      _
    %380 = vsyncpa [#allocation4], 1
    %381 = vsyncpa [#allocation7], 1
    %382 = vsyncpa [#allocation10], 1
    %383 = vsyncpa [#allocation5], 1

// kernel: tpu_custom_call.1
$region0: #{tpu_custom_call.1}
  #allocation0 [shape = 'u32[]', space=smem, size = 0x4, offset = 0x4, fixed_abs, tag = 'smem constant byte address 0x4 - core index']
  #allocation1 [shape = 'u32[144,128]{1,0:T(1,128)}', space=vmem, size = 0x12000, scoped, tag = 'internal scratch']
  #allocation2 [shape = 'f32[8,128]{1,0:T(8,128)}', space=vmem, size = 0x1000, scoped, tag = 'scratch operand']
  %s0 = inlined_call_operand.hbm [shape: f32[8,128], index: 0, kind: input, shape index: {}]
  %s1 = inlined_call_operand.hbm [shape: f32[128,128], index: 1, kind: input, shape index: {}]
  %s2 = inlined_call_operand.vmem [shape: f32[1,128], index: 2, kind: input, shape index: {}]
  %s3 = inlined_call_operand.hbm [shape: f32[128,128], index: 3, kind: input, shape index: {}]
  %s4 = inlined_call_operand.vmem [shape: f32[1,128], index: 4, kind: input, shape index: {}]
  %s5 = inlined_call_operand.hbm [shape: f32[128,128], index: 5, kind: input, shape index: {}]
  %s6 = inlined_call_operand.vmem [shape: f32[1,128], index: 6, kind: input, shape index: {}]
  %s7 = inlined_call_operand.hbm [shape: f32[8,128], index: 7, kind: output, shape index: {}]
  %s8 = sld [smem:[#allocation0]]
  $region58: #{tpu_custom_call.1} parent=0
    _
  %s10 = ssub.s32 1, %s8
  %s11 = scalar_select 0, %s10, %s8
  $region1: #{tpu_custom_call.1} parent=0
    #allocation3 [shape = 'u8[4096]{0}', space=vmem, size = 0x1000, scoped, tag = 'input window, operand 0, single buffered']
    #allocation4 [shape = 's32[1]{0}', space=sflag, size = 0x4, scoped, tag = 'scoped memory for tpu_custom_call.1']
    #allocation5 [shape = 's32[1]{0}', space=sflag, size = 0x4, scoped, tag = 'scoped memory for tpu_custom_call.1']
    #allocation6 [shape = 'u8[65536]{0}', space=vmem, size = 0x10000, scoped, tag = 'input window, operand 1, single buffered']
    #allocation7 [shape = 's32[1]{0}', space=sflag, size = 0x4, scoped, tag = 'scoped memory for tpu_custom_call.1']
    #allocation8 [shape = 'u8[65536]{0}', space=vmem, size = 0x10000, scoped, tag = 'input window, operand 3, single buffered']
    #allocation9 [shape = 'u8[65536]{0}', space=vmem, size = 0x10000, scoped, tag = 'input window, operand 5, single buffered']
    #allocation10 [shape = 's32[1]{0}', space=sflag, size = 0x4, scoped, tag = 'scoped memory for tpu_custom_call.1']
    #allocation11 [shape = 'u8[4096]{0}', space=vmem, size = 0x1000, scoped, tag = 'output window, operand 0, single buffered']
    %12 = vsyncpa [#allocation4], 0
    %13 = vsyncpa [#allocation7], 0
    %14 = vsyncpa [#allocation10], 0
    %15 = vsyncpa [#allocation5], 0
    // Predicated region
    $region2: #{tpu_custom_call.1} parent=1 // pred_check
      _
    $region3: #{tpu_custom_call.1} parent=1 // pred_check_branch
      %17 = sbr.rel (0) target = $region5
    $region4: #{tpu_custom_call.1} parent=1 // pred_region
      %s19 = ssub.s32 128, 128
      %20 = vsyncadd [#allocation4], %s19
      %s22 = sshll.u32 [#allocation3], 4
      %s23 = int_to_ptr.vmem [resolvable:$true] %s22
      %25 = dma.hbm_to_vmem [thread:$0]  %s0, 128, %s23, [#allocation4]
    $region5: #{tpu_custom_call.1} parent=1 // pred_fallthru
      _
    // Predicated region
    $region6: #{tpu_custom_call.1} parent=1 // pred_check
      _
    $region7: #{tpu_custom_call.1} parent=1 // pred_check_branch
      %27 = sbr.rel (0) target = $region9
    $region8: #{tpu_custom_call.1} parent=1 // pred_region
      %s29 = ssub.s32 2048, 2048
      %30 = vsyncadd [#allocation7], %s29
      %s31 = sshll.u32 [#allocation6], 4
      %s32 = int_to_ptr.vmem [resolvable:$true] %s31
      %37 = dma.hbm_to_vmem [thread:$0]  %s1, 2048, %s32, [#allocation7], 128, 128, 8
    $region9: #{tpu_custom_call.1} parent=1 // pred_fallthru
      _
    // Predicated region
    $region10: #{tpu_custom_call.1} parent=1 // pred_check
      _
    $region11: #{tpu_custom_call.1} parent=1 // pred_check_branch
      %39 = sbr.rel (0) target = $region13
    $region12: #{tpu_custom_call.1} parent=1 // pred_region
      _
    $region13: #{tpu_custom_call.1} parent=1 // pred_fallthru
      _
    // Predicated region
    $region14: #{tpu_custom_call.1} parent=1 // pred_check
      _
    $region15: #{tpu_custom_call.1} parent=1 // pred_check_branch
      %41 = sbr.rel (0) target = $region17
    $region16: #{tpu_custom_call.1} parent=1 // pred_region
      %s43 = ssub.s32 2048, 2048
      %44 = vsyncadd [#allocation7], %s43
      %s45 = sshll.u32 [#allocation8], 4
      %s46 = int_to_ptr.vmem [resolvable:$true] %s45
      %51 = dma.hbm_to_vmem [thread:$0]  %s3, 2048, %s46, [#allocation7], 128, 128, 8
    $region17: #{tpu_custom_call.1} parent=1 // pred_fallthru
      _
    // Predicated region
    $region18: #{tpu_custom_call.1} parent=1 // pred_check
      _
    $region19: #{tpu_custom_call.1} parent=1 // pred_check_branch
      %53 = sbr.rel (0) target = $region21
    $region20: #{tpu_custom_call.1} parent=1 // pred_region
      _
    $region21: #{tpu_custom_call.1} parent=1 // pred_fallthru
      _
    // Predicated region
    $region22: #{tpu_custom_call.1} parent=1 // pred_check
      _
    $region23: #{tpu_custom_call.1} parent=1 // pred_check_branch
      %55 = sbr.rel (0) target = $region25
    $region24: #{tpu_custom_call.1} parent=1 // pred_region
      %s57 = ssub.s32 2048, 2048
      %58 = vsyncadd [#allocation10], %s57
      %s59 = sshll.u32 [#allocation9], 4
      %s60 = int_to_ptr.vmem [resolvable:$true] %s59
      %65 = dma.hbm_to_vmem [thread:$0]  %s5, 2048, %s60, [#allocation10], 128, 128, 8
    $region25: #{tpu_custom_call.1} parent=1 // pred_fallthru
      _
    // Predicated region
    $region26: #{tpu_custom_call.1} parent=1 // pred_check
      _
    $region27: #{tpu_custom_call.1} parent=1 // pred_check_branch
      %67 = sbr.rel (0) target = $region29
    $region28: #{tpu_custom_call.1} parent=1 // pred_region
      _
    $region29: #{tpu_custom_call.1} parent=1 // pred_fallthru
      _
    // Predicated region
    $region30: #{tpu_custom_call.1} parent=1 // pred_check
      _
    $region31: #{tpu_custom_call.1} parent=1 // pred_check_branch
      %69 = sbr.rel (0) target = $region33
    $region32: #{tpu_custom_call.1} parent=1 // pred_region
      %70 = dma.done [#allocation4], 128
    $region33: #{tpu_custom_call.1} parent=1 // pred_fallthru
      _
    // Predicated region
    $region34: #{tpu_custom_call.1} parent=1 // pred_check
      _
    $region35: #{tpu_custom_call.1} parent=1 // pred_check_branch
      %72 = sbr.rel (0) target = $region37
    $region36: #{tpu_custom_call.1} parent=1 // pred_region
      %73 = dma.done [#allocation7], 2048
    $region37: #{tpu_custom_call.1} parent=1 // pred_fallthru
      _
    // Predicated region
    $region38: #{tpu_custom_call.1} parent=1 // pred_check
      _
    $region39: #{tpu_custom_call.1} parent=1 // pred_check_branch
      %75 = sbr.rel (0) target = $region41
    $region40: #{tpu_custom_call.1} parent=1 // pred_region
      %76 = dma.done [#allocation7], 2048
    $region41: #{tpu_custom_call.1} parent=1 // pred_fallthru
      _
    // Predicated region
    $region42: #{tpu_custom_call.1} parent=1 // pred_check
      _
    $region43: #{tpu_custom_call.1} parent=1 // pred_check_branch
      %78 = sbr.rel (0) target = $region45
    $region44: #{tpu_custom_call.1} parent=1 // pred_region
      %79 = dma.done [#allocation10], 2048
    $region45: #{tpu_custom_call.1} parent=1 // pred_fallthru
      _
    %p80 = scmp.eq.s32.totalorder 0, 0
    // Predicated region
    $region46: #{tpu_custom_call.1} parent=1 // pred_check
      %p81 = pneg %p80
    $region47: #{tpu_custom_call.1} parent=1 // pred_check_branch
      %83 = sbr.rel (%p81) target = $region49
    $region48: #{tpu_custom_call.1} parent=1 // pred_region
      %v84 = vld [vmem:[#allocation3] sm:$0xff]
      %v85 = vld [vmem:[#allocation6] sm:$0xff]
      %v86 = vld [vmem:[#allocation6 + $0x8] sm:$0xff]
      %v87 = vld [vmem:[#allocation6 + $0x10] sm:$0xff]
      %v88 = vld [vmem:[#allocation6 + $0x18] sm:$0xff]
      %v89 = vld [vmem:[#allocation6 + $0x20] sm:$0xff]
      %v90 = vld [vmem:[#allocation6 + $0x28] sm:$0xff]
      %v91 = vld [vmem:[#allocation6 + $0x30] sm:$0xff]
      %v92 = vld [vmem:[#allocation6 + $0x38] sm:$0xff]
      %v93 = vld [vmem:[#allocation6 + $0x40] sm:$0xff]
      %v94 = vld [vmem:[#allocation6 + $0x48] sm:$0xff]
      %v95 = vld [vmem:[#allocation6 + $0x50] sm:$0xff]
      %v96 = vld [vmem:[#allocation6 + $0x58] sm:$0xff]
      %v97 = vld [vmem:[#allocation6 + $0x60] sm:$0xff]
      %v98 = vld [vmem:[#allocation6 + $0x68] sm:$0xff]
      %v99 = vld [vmem:[#allocation6 + $0x70] sm:$0xff]
      %v100 = vld [vmem:[#allocation6 + $0x78] sm:$0xff]
      %v101 = vld [vmem:[%s2] sm:$0x1]
      %v103 = vlaneseq
      %v104 = vshrl.u32 %v103, 7
      %v105 = vsub.s32 0, %v104
      %v106 = vrot.slane %v101, %v105
      %108 = vmatprep.subr.mxu0 0.0
      %109 = vmatpush1.msra.mxu0 %v100
      %110 = vmatprep.subr.mxu0 0.0
      %111 = vmatpush1.msra.mxu0 %v99
      %112 = vmatprep.subr.mxu0 0.0
      %113 = vmatpush1.msra.mxu0 %v98
      %114 = vmatprep.subr.mxu0 0.0
      %115 = vmatpush1.msra.mxu0 %v97
      %116 = vmatprep.subr.mxu0 0.0
      %117 = vmatpush1.msra.mxu0 %v96
      %118 = vmatprep.subr.mxu0 0.0
      %119 = vmatpush1.msra.mxu0 %v95
      %120 = vmatprep.subr.mxu0 0.0
      %121 = vmatpush1.msra.mxu0 %v94
      %122 = vmatprep.subr.mxu0 0.0
      %123 = vmatpush1.msra.mxu0 %v93
      %124 = vmatprep.subr.mxu0 0.0
      %125 = vmatpush1.msra.mxu0 %v92
      %126 = vmatprep.subr.mxu0 0.0
      %127 = vmatpush1.msra.mxu0 %v91
      %128 = vmatprep.subr.mxu0 0.0
      %129 = vmatpush1.msra.mxu0 %v90
      %130 = vmatprep.subr.mxu0 0.0
      %131 = vmatpush1.msra.mxu0 %v89
      %132 = vmatprep.subr.mxu0 0.0
      %133 = vmatpush1.msra.mxu0 %v88
      %134 = vmatprep.subr.mxu0 0.0
      %135 = vmatpush1.msra.mxu0 %v87
      %136 = vmatprep.subr.mxu0 0.0
      %137 = vmatpush1.msra.mxu0 %v86
      %138 = vmatprep.subr.mxu0 0.0
      %139 = vmatpush1.msra.mxu0 %v85
      %140 = vmatprep.subr.mxu0 0.0
      %141 = vmatpush2.msra.mxu0 0.0
      %142 = vmatprep.subr.mxu0 0.0
      %143 = vmatpush2.msra.mxu0 0.0
      %144 = vmatprep.subr.mxu0 0.0
      %145 = vmatpush2.msra.mxu0 0.0
      %146 = vmatprep.subr.mxu0 0.0
      %147 = vmatpush2.msra.mxu0 0.0
      %148 = vmatprep.subr.mxu0 0.0
      %149 = vmatpush2.msra.mxu0 0.0
      %150 = vmatprep.subr.mxu0 0.0
      %151 = vmatpush2.msra.mxu0 0.0
      %152 = vmatprep.subr.mxu0 0.0
      %153 = vmatpush2.msra.mxu0 0.0
      %154 = vmatprep.subr.mxu0 0.0
      %155 = vmatpush2.msra.mxu0 0.0
      %156 = vmatprep.subr.mxu0 0.0
      %157 = vmatpush2.msra.mxu0 0.0
      %158 = vmatprep.subr.mxu0 0.0
      %159 = vmatpush2.msra.mxu0 0.0
      %160 = vmatprep.subr.mxu0 0.0
      %161 = vmatpush2.msra.mxu0 0.0
      %162 = vmatprep.subr.mxu0 0.0
      %163 = vmatpush2.msra.mxu0 0.0
      %164 = vmatprep.subr.mxu0 0.0
      %165 = vmatpush2.msra.mxu0 0.0
      %166 = vmatprep.subr.mxu0 0.0
      %167 = vmatpush2.msra.mxu0 0.0
      %168 = vmatprep.subr.mxu0 0.0
      %169 = vmatpush2.msra.mxu0 0.0
      %170 = vmatprep.subr.mxu0 0.0
      %171 = vmatpush2.msra.mxu0 0.0
      %172 = vmatprep.mubr.f32.mxu0 0.0
      %173 = vmatmul.mubr.f32.gmra.mxu0 %v84
      %v174 = vpop.f32.mrf.mxu0
      %v175 = vadd.f32 %v106, %v174
      %v176 = vpop.f32.mrf.mxu0
      %177 = vdwg.mxu0
      %v178 = vld [vmem:[#allocation8] sm:$0xff]
      %v179 = vld [vmem:[#allocation8 + $0x8] sm:$0xff]
      %v180 = vld [vmem:[#allocation8 + $0x10] sm:$0xff]
      %v181 = vld [vmem:[#allocation8 + $0x18] sm:$0xff]
      %v182 = vld [vmem:[#allocation8 + $0x20] sm:$0xff]
      %v183 = vld [vmem:[#allocation8 + $0x28] sm:$0xff]
      %v184 = vld [vmem:[#allocation8 + $0x30] sm:$0xff]
      %v185 = vld [vmem:[#allocation8 + $0x38] sm:$0xff]
      %v186 = vld [vmem:[#allocation8 + $0x40] sm:$0xff]
      %v187 = vld [vmem:[#allocation8 + $0x48] sm:$0xff]
      %v188 = vld [vmem:[#allocation8 + $0x50] sm:$0xff]
      %v189 = vld [vmem:[#allocation8 + $0x58] sm:$0xff]
      %v190 = vld [vmem:[#allocation8 + $0x60] sm:$0xff]
      %v191 = vld [vmem:[#allocation8 + $0x68] sm:$0xff]
      %v192 = vld [vmem:[#allocation8 + $0x70] sm:$0xff]
      %v193 = vld [vmem:[#allocation8 + $0x78] sm:$0xff]
      %v194 = vld [vmem:[%s4] sm:$0x1]
      %v196 = vlaneseq
      %v197 = vshrl.u32 %v196, 7
      %v198 = vsub.s32 0, %v197
      %v199 = vrot.slane %v194, %v198
      %201 = vmatprep.subr.mxu0 0.0
      %202 = vmatpush1.msra.mxu0 %v193
      %203 = vmatprep.subr.mxu0 0.0
      %204 = vmatpush1.msra.mxu0 %v192
      %205 = vmatprep.subr.mxu0 0.0
      %206 = vmatpush1.msra.mxu0 %v191
      %207 = vmatprep.subr.mxu0 0.0
      %208 = vmatpush1.msra.mxu0 %v190
      %209 = vmatprep.subr.mxu0 0.0
      %210 = vmatpush1.msra.mxu0 %v189
      %211 = vmatprep.subr.mxu0 0.0
      %212 = vmatpush1.msra.mxu0 %v188
      %213 = vmatprep.subr.mxu0 0.0
      %214 = vmatpush1.msra.mxu0 %v187
      %215 = vmatprep.subr.mxu0 0.0
      %216 = vmatpush1.msra.mxu0 %v186
      %217 = vmatprep.subr.mxu0 0.0
      %218 = vmatpush1.msra.mxu0 %v185
      %219 = vmatprep.subr.mxu0 0.0
      %220 = vmatpush1.msra.mxu0 %v184
      %221 = vmatprep.subr.mxu0 0.0
      %222 = vmatpush1.msra.mxu0 %v183
      %223 = vmatprep.subr.mxu0 0.0
      %224 = vmatpush1.msra.mxu0 %v182
      %225 = vmatprep.subr.mxu0 0.0
      %226 = vmatpush1.msra.mxu0 %v181
      %227 = vmatprep.subr.mxu0 0.0
      %228 = vmatpush1.msra.mxu0 %v180
      %229 = vmatprep.subr.mxu0 0.0
      %230 = vmatpush1.msra.mxu0 %v179
      %231 = vmatprep.subr.mxu0 0.0
      %232 = vmatpush1.msra.mxu0 %v178
      %233 = vmatprep.subr.mxu0 0.0
      %234 = vmatpush2.msra.mxu0 0.0
      %235 = vmatprep.subr.mxu0 0.0
      %236 = vmatpush2.msra.mxu0 0.0
      %237 = vmatprep.subr.mxu0 0.0
      %238 = vmatpush2.msra.mxu0 0.0
      %239 = vmatprep.subr.mxu0 0.0
      %240 = vmatpush2.msra.mxu0 0.0
      %241 = vmatprep.subr.mxu0 0.0
      %242 = vmatpush2.msra.mxu0 0.0
      %243 = vmatprep.subr.mxu0 0.0
      %244 = vmatpush2.msra.mxu0 0.0
      %245 = vmatprep.subr.mxu0 0.0
      %246 = vmatpush2.msra.mxu0 0.0
      %247 = vmatprep.subr.mxu0 0.0
      %248 = vmatpush2.msra.mxu0 0.0
      %249 = vmatprep.subr.mxu0 0.0
      %250 = vmatpush2.msra.mxu0 0.0
      %251 = vmatprep.subr.mxu0 0.0
      %252 = vmatpush2.msra.mxu0 0.0
      %253 = vmatprep.subr.mxu0 0.0
      %254 = vmatpush2.msra.mxu0 0.0
      %255 = vmatprep.subr.mxu0 0.0
      %256 = vmatpush2.msra.mxu0 0.0
      %257 = vmatprep.subr.mxu0 0.0
      %258 = vmatpush2.msra.mxu0 0.0
      %259 = vmatprep.subr.mxu0 0.0
      %260 = vmatpush2.msra.mxu0 0.0
      %261 = vmatprep.subr.mxu0 0.0
      %262 = vmatpush2.msra.mxu0 0.0
      %263 = vmatprep.subr.mxu0 0.0
      %264 = vmatpush2.msra.mxu0 0.0
      %265 = vmatprep.mubr.f32.mxu0 0.0
      %266 = vmatmul.mubr.f32.gmra.mxu0 %v175
      %v267 = vpop.f32.mrf.mxu0
      %v268 = vadd.f32 %v199, %v267
      %v269 = vpop.f32.mrf.mxu0
      %270 = vdwg.mxu0
      %271 = vst [vmem:[#allocation2] sm:$0xff] %v268
    $region49: #{tpu_custom_call.1} parent=1 // pred_fallthru
      _
    %v272 = vld [vmem:[#allocation9] sm:$0xff]
    %v273 = vld [vmem:[#allocation9 + $0x8] sm:$0xff]
    %v274 = vld [vmem:[#allocation9 + $0x10] sm:$0xff]
    %v275 = vld [vmem:[#allocation9 + $0x18] sm:$0xff]
    %v276 = vld [vmem:[#allocation9 + $0x20] sm:$0xff]
    %v277 = vld [vmem:[#allocation9 + $0x28] sm:$0xff]
    %v278 = vld [vmem:[#allocation9 + $0x30] sm:$0xff]
    %v279 = vld [vmem:[#allocation9 + $0x38] sm:$0xff]
    %v280 = vld [vmem:[#allocation9 + $0x40] sm:$0xff]
    %v281 = vld [vmem:[#allocation9 + $0x48] sm:$0xff]
    %v282 = vld [vmem:[#allocation9 + $0x50] sm:$0xff]
    %v283 = vld [vmem:[#allocation9 + $0x58] sm:$0xff]
    %v284 = vld [vmem:[#allocation9 + $0x60] sm:$0xff]
    %v285 = vld [vmem:[#allocation9 + $0x68] sm:$0xff]
    %v286 = vld [vmem:[#allocation9 + $0x70] sm:$0xff]
    %v287 = vld [vmem:[#allocation9 + $0x78] sm:$0xff]
    %v288 = vld [vmem:[%s6] sm:$0x1]
    %v289 = vld [vmem:[#allocation2] sm:$0xff]
    %v291 = vlaneseq
    %v292 = vshrl.u32 %v291, 7
    %v293 = vsub.s32 0, %v292
    %v294 = vrot.slane %v288, %v293
    %296 = vmatprep.subr.mxu0 0.0
    %297 = vmatpush1.msra.mxu0 %v287
    %298 = vmatprep.subr.mxu0 0.0
    %299 = vmatpush1.msra.mxu0 %v286
    %300 = vmatprep.subr.mxu0 0.0
    %301 = vmatpush1.msra.mxu0 %v285
    %302 = vmatprep.subr.mxu0 0.0
    %303 = vmatpush1.msra.mxu0 %v284
    %304 = vmatprep.subr.mxu0 0.0
    %305 = vmatpush1.msra.mxu0 %v283
    %306 = vmatprep.subr.mxu0 0.0
    %307 = vmatpush1.msra.mxu0 %v282
    %308 = vmatprep.subr.mxu0 0.0
    %309 = vmatpush1.msra.mxu0 %v281
    %310 = vmatprep.subr.mxu0 0.0
    %311 = vmatpush1.msra.mxu0 %v280
    %312 = vmatprep.subr.mxu0 0.0
    %313 = vmatpush1.msra.mxu0 %v279
    %314 = vmatprep.subr.mxu0 0.0
    %315 = vmatpush1.msra.mxu0 %v278
    %316 = vmatprep.subr.mxu0 0.0
    %317 = vmatpush1.msra.mxu0 %v277
    %318 = vmatprep.subr.mxu0 0.0
    %319 = vmatpush1.msra.mxu0 %v276
    %320 = vmatprep.subr.mxu0 0.0
    %321 = vmatpush1.msra.mxu0 %v275
    %322 = vmatprep.subr.mxu0 0.0
    %323 = vmatpush1.msra.mxu0 %v274
    %324 = vmatprep.subr.mxu0 0.0
    %325 = vmatpush1.msra.mxu0 %v273
    %326 = vmatprep.subr.mxu0 0.0
    %327 = vmatpush1.msra.mxu0 %v272
    %328 = vmatprep.subr.mxu0 0.0
    %329 = vmatpush2.msra.mxu0 0.0
    %330 = vmatprep.subr.mxu0 0.0
    %331 = vmatpush2.msra.mxu0 0.0
    %332 = vmatprep.subr.mxu0 0.0
    %333 = vmatpush2.msra.mxu0 0.0
    %334 = vmatprep.subr.mxu0 0.0
    %335 = vmatpush2.msra.mxu0 0.0
    %336 = vmatprep.subr.mxu0 0.0
    %337 = vmatpush2.msra.mxu0 0.0
    %338 = vmatprep.subr.mxu0 0.0
    %339 = vmatpush2.msra.mxu0 0.0
    %340 = vmatprep.subr.mxu0 0.0
    %341 = vmatpush2.msra.mxu0 0.0
    %342 = vmatprep.subr.mxu0 0.0
    %343 = vmatpush2.msra.mxu0 0.0
    %344 = vmatprep.subr.mxu0 0.0
    %345 = vmatpush2.msra.mxu0 0.0
    %346 = vmatprep.subr.mxu0 0.0
    %347 = vmatpush2.msra.mxu0 0.0
    %348 = vmatprep.subr.mxu0 0.0
    %349 = vmatpush2.msra.mxu0 0.0
    %350 = vmatprep.subr.mxu0 0.0
    %351 = vmatpush2.msra.mxu0 0.0
    %352 = vmatprep.subr.mxu0 0.0
    %353 = vmatpush2.msra.mxu0 0.0
    %354 = vmatprep.subr.mxu0 0.0
    %355 = vmatpush2.msra.mxu0 0.0
    %356 = vmatprep.subr.mxu0 0.0
    %357 = vmatpush2.msra.mxu0 0.0
    %358 = vmatprep.subr.mxu0 0.0
    %359 = vmatpush2.msra.mxu0 0.0
    %360 = vmatprep.mubr.f32.mxu0 0.0
    %361 = vmatmul.mubr.f32.gmra.mxu0 %v289
    %v362 = vpop.f32.mrf.mxu0
    %v363 = vadd.f32 %v294, %v362
    %v364 = vpop.f32.mrf.mxu0
    %365 = vdwg.mxu0
    %366 = vst [vmem:[#allocation11] sm:$0xff] %v363
    // Predicated region
    $region50: #{tpu_custom_call.1} parent=1 // pred_check
      _
    $region51: #{tpu_custom_call.1} parent=1 // pred_check_branch
      %368 = sbr.rel (0) target = $region53
    $region52: #{tpu_custom_call.1} parent=1 // pred_region
      %s370 = ssub.s32 128, 128
      %371 = vsyncadd [#allocation5], %s370
      %s373 = sshll.u32 [#allocation11], 4
      %s374 = int_to_ptr.vmem [resolvable:$true] %s373
      %376 = dma.vmem_to_hbm [thread:$0]  %s374, 128, %s7, [#allocation5]
    $region53: #{tpu_custom_call.1} parent=1 // pred_fallthru
      _
    // Predicated region
    $region54: #{tpu_custom_call.1} parent=1 // pred_check
      _
    $region55: #{tpu_custom_call.1} parent=1 // pred_check_branch
      %378 = sbr.rel (0) target = $region57
    $region56: #{tpu_custom_call.1} parent=1 // pred_region
      %379 = dma.done [#allocation5], 128
    $region57: #{tpu_custom_call.1} parent=1 // pred_fallthru
      _
    %380 = vsyncpa [#allocation4], 1
    %381 = vsyncpa [#allocation7], 1
    %382 = vsyncpa [#allocation10], 1
    %383 = vsyncpa [#allocation5], 1

</llo_original>
